<compile_context>
chip_gen: v5e
topology: v5e:2x2
jax: 0.10.0
libtpu: 0.0.40
codegen_flags: <defaults>
</compile_context>

<pallas_src>
import functools

import jax
import jax.numpy as jnp
from jax import lax
from jax.experimental import pallas as pl
from jax.experimental.pallas import tpu as pltpu


def _head_kernel(x_ref, w1_ref, w2_ref, o_ref, *, tanh_dtype):
    # x_ref: (bt, K)   w1_ref: (H, K)   w2_ref: (1, H)   o_ref: (1, bt)
    # First matmul on the MXU, contracting K of both operands, so the batch
    # axis lands on the lane (last) axis of the result with no host transpose:
    #   h[h, b] = sum_k w1[h, k] * x[b, k]        -> (H, bt)
    h = lax.dot_general(
        w1_ref[...], x_ref[...],
        dimension_numbers=(((1,), (1,)), ((), ())),
        preferred_element_type=jnp.float32)
    if tanh_dtype is not None:
        # bf16 EUP tanh (v6e/v7x): ~2x the f32 rate; keep h in bf16 so the
        # second matmul is a native bf16 MXU op (no vcvt back to f32).
        h = jnp.tanh(h.astype(tanh_dtype))
        w2 = w2_ref[...].astype(tanh_dtype)
    else:
        h = jnp.tanh(h)                                     # EUP, f32
        w2 = w2_ref[...]
    y = jnp.dot(w2, h, preferred_element_type=jnp.float32)  # (1, bt), lane-dense
    o_ref[...] = y.astype(o_ref.dtype)


def _round_up(n, m):
    return ((n + m - 1) // m) * m


def nn_head_resnet50sw(x, w1, w2, *, block_b=8192, min_grid_steps=4,
                       tanh_dtype=None, compute_dtype=None):
    """x: (B, 40), w1: (80, 40), w2: (1, 80)  (PyTorch weight layouts) -> (B, 1)."""
    B, K = x.shape
    H = w1.shape[0]
    assert w1.shape == (H, K) and w2.shape == (1, H)
    out_dtype = x.dtype

    if compute_dtype is not None:
        # Halves the dominant x HBM stream on mem-bound chips (v5e/v6e).
        x = x.astype(compute_dtype)
        w1 = w1.astype(compute_dtype)
        w2 = w2.astype(compute_dtype)

    # Batch tile: multiple of 128 (lane-dense output blocks), at most block_b,
    # and capped so the grid keeps >= min_grid_steps steps when B allows
    # (megacore split on v7x + DMA/compute overlap both need >= 2 steps).
    bt = min(_round_up(block_b, 128), _round_up(B, 128))
    bt = max(128, min(bt, max(128, _round_up(pl.cdiv(B, min_grid_steps), 128))))
    grid = (pl.cdiv(B, bt),)

    x_itemsize = jnp.dtype(x.dtype).itemsize
    w_itemsize = jnp.dtype(w1.dtype).itemsize
    cost = pl.CostEstimate(
        flops=2 * B * (H * K + H),
        transcendentals=B * H,
        bytes_accessed=(B * K * x_itemsize
                        + (H * K + H) * w_itemsize
                        + B * jnp.dtype(out_dtype).itemsize),
    )

    y_row = pl.pallas_call(
        functools.partial(_head_kernel, tanh_dtype=tanh_dtype),
        out_shape=jax.ShapeDtypeStruct((1, B), out_dtype),
        grid=grid,
        in_specs=[
            pl.BlockSpec((bt, K), lambda i: (i, 0)),   # x streamed, natural layout
            pl.BlockSpec((H, K), lambda i: (0, 0)),    # W1 resident in VMEM
            pl.BlockSpec((1, H), lambda i: (0, 0)),    # W2 resident in VMEM
        ],
        out_specs=pl.BlockSpec((1, bt), lambda i: (0, i)),  # lane-dense output
        compiler_params=pltpu.CompilerParams(
            dimension_semantics=("parallel",),         # megacore split on v7x
            vmem_limit_bytes=48 * 1024 * 1024,         # big-bt tiles; <=48 MiB for v7x
        ),
        cost_estimate=cost,
    )(x, w1, w2)

    # (1, B) -> (B, 1): same row-major data, pure reshape (no transpose pass).
    return y_row.reshape(B, 1)


def init_params(key):
    """Deterministic init mimicking nn.Linear default (uniform +-1/sqrt(fan_in)),
    weights kept in PyTorch (out_features, in_features) layout."""
    k1, k2 = jax.random.split(key)
    bound1 = 1.0 / jnp.sqrt(40.0)
    bound2 = 1.0 / jnp.sqrt(80.0)
    w1 = jax.random.uniform(k1, (80, 40), jnp.float32, -bound1, bound1)
    w2 = jax.random.uniform(k2, (1, 80), jnp.float32, -bound2, bound2)
    return w1, w2


if __name__ == "__main__":
    key = jax.random.PRNGKey(0)
    kx, kp = jax.random.split(key)

    # B chosen to exercise a multi-step grid plus a ragged last tile:
    # bt is capped to keep >=4 grid steps -> bt=768, grid=(4,), last tile partial.
    B = 3000
    x = jax.random.normal(kx, (B, 40), jnp.float32)
    w1, w2 = init_params(kp)

    y = nn_head_resnet50sw(x, w1, w2)
    y = jax.block_until_ready(y)

    # Pure-JAX reference (same PyTorch semantics).
    y_ref = jnp.tanh(x @ w1.T) @ w2.T
    assert y.shape == (B, 1)
    assert jnp.allclose(y, y_ref, atol=1e-4, rtol=1e-4)

    print("KERNEL_OK")
</pallas_src>

<mosaic_0001>
module attributes {stable_mosaic.version = 11 : i64} {
  func.func @_head_kernel(%arg0: i32, %arg1: memref<768x40xf32, #tpu.memory_space<vmem>>, %arg2: memref<80x40xf32, #tpu.memory_space<vmem>>, %arg3: memref<1x80xf32, #tpu.memory_space<vmem>>, %arg4: memref<1x768xf32, #tpu.memory_space<vmem>>) attributes {dimension_semantics = [#tpu.dimension_semantics<parallel>], iteration_bounds = array<i64: 4>, scalar_prefetch = 0 : i64, scratch_operands = 0 : i64, tpu.core_type = #tpu.core_type<tc>, window_params = [{transform_indices = @transform_0, window_bounds = array<i64: 768, 40>}, {pipeline_mode = #tpu.pipeline_mode<synchronous>, transform_indices = @transform_1, window_bounds = array<i64: 80, 40>}, {pipeline_mode = #tpu.pipeline_mode<synchronous>, transform_indices = @transform_2, window_bounds = array<i64: 1, 80>}, {transform_indices = @transform_3, window_bounds = array<i64: 1, 768>}]} {
    %c0 = arith.constant 0 : index
    %c0_0 = arith.constant 0 : index
    %0 = vector.load %arg2[%c0, %c0_0] : memref<80x40xf32, #tpu.memory_space<vmem>>, vector<80x40xf32>
    %c0_1 = arith.constant 0 : index
    %c0_2 = arith.constant 0 : index
    %1 = vector.load %arg1[%c0_1, %c0_2] : memref<768x40xf32, #tpu.memory_space<vmem>>, vector<768x40xf32>
    %cst = arith.constant dense<0.000000e+00> : vector<80x768xf32>
    %2 = tpu.matmul %0, %1, %cst {dimension_numbers = #tpu.dot_dimension_numbers<[1], [1], [0], [0], [0, 0, 1, 0], [], []>} : vector<80x40xf32>, vector<768x40xf32>, vector<80x768xf32> -> vector<80x768xf32>
    %3 = math.tanh %2 : vector<80x768xf32>
    %c0_3 = arith.constant 0 : index
    %c0_4 = arith.constant 0 : index
    %4 = vector.load %arg3[%c0_3, %c0_4] : memref<1x80xf32, #tpu.memory_space<vmem>>, vector<1x80xf32>
    %cst_5 = arith.constant dense<0.000000e+00> : vector<1x768xf32>
    %5 = tpu.matmul %4, %3, %cst_5 {dimension_numbers = #tpu.dot_dimension_numbers<[1], [0], [0], [1], [0, 0, 1, 1], [], []>} : vector<1x80xf32>, vector<80x768xf32>, vector<1x768xf32> -> vector<1x768xf32>
    %c0_6 = arith.constant 0 : index
    %c0_7 = arith.constant 0 : index
    %6 = vector.load %arg4[%c0_6, %c0_7] : memref<1x768xf32, #tpu.memory_space<vmem>>, vector<1x768xf32>
    tpu.vector_store %arg4[%c0_6, %c0_7], %5 {strides = array<i32>} : memref<1x768xf32, #tpu.memory_space<vmem>>, vector<1x768xf32>,
    return
  }
  func.func @transform_0(%arg0: i32) -> (i32, i32) {
    %c0_i32 = arith.constant 0 : i32
    %c0_i32_0 = arith.constant 0 : i32
    return %arg0, %c0_i32 : i32, i32
  }
  func.func @transform_1(%arg0: i32) -> (i32, i32) {
    %c0_i32 = arith.constant 0 : i32
    %c0_i32_0 = arith.constant 0 : i32
    %c0_i32_1 = arith.constant 0 : i32
    return %c0_i32, %c0_i32_0 : i32, i32
  }
  func.func @transform_2(%arg0: i32) -> (i32, i32) {
    %c0_i32 = arith.constant 0 : i32
    %c0_i32_0 = arith.constant 0 : i32
    %c0_i32_1 = arith.constant 0 : i32
    return %c0_i32, %c0_i32_0 : i32, i32
  }
  func.func @transform_3(%arg0: i32) -> (i32, i32) {
    %c0_i32 = arith.constant 0 : i32
    %c0_i32_0 = arith.constant 0 : i32
    return %c0_i32, %arg0 : i32, i32
  }
}

</mosaic_0001>

<llo_original>
// kernel: tpu_custom_call.1
$region0: #{tpu_custom_call.1}
  #allocation0 [shape = 'u32[]', space=smem, size = 0x4, offset = 0x4, fixed_abs, tag = 'smem constant byte address 0x4 - core index']
  #allocation1 [shape = 'u32[72,128]{1,0:T(1,128)}', space=vmem, size = 0x9000, scoped, tag = 'internal scratch']
  %s0 = inlined_call_operand.vmem [shape: f32[3000,40], index: 0, kind: input, shape index: {}]
  %s1 = inlined_call_operand.vmem [shape: f32[80,40], index: 1, kind: input, shape index: {}]
  %s2 = inlined_call_operand.vmem [shape: f32[1,80], index: 2, kind: input, shape index: {}]
  %s3 = inlined_call_operand.hbm [shape: f32[1,3000], index: 3, kind: output, shape index: {}]
  %s4 = sld [smem:[#allocation0]]
  $region45: #{tpu_custom_call.1} parent=0
    _
  %s6 = ssub.s32 1, %s4
  %s7 = scalar_select 0, %s6, %s4
  $region1: #{tpu_custom_call.1} parent=0
    #allocation2 [shape = 'u8[6144]{0}', space=vmem, size = 0x1800, scoped, tag = 'output window, operand 0']
    #allocation3 [shape = 's32[2]{0}', space=sflag, size = 0x8, scoped, tag = 'scoped memory for tpu_custom_call.1']
    %8 = vsyncpa [#allocation3], 0
    %s9 = scalar_lea.sflag [#allocation3], 1
    %10 = vsyncpa %s9, 0
    loop: start=0, step=1, limit=6
    $region2: #{tpu_custom_call.1} parent=1 // loop_pre_header
      _
    $region3: #{tpu_custom_call.1} parent=1 // loop_header
      %s12 = sphi 0, %s16
      %p13 = scmp.ge.s32.totalorder %s12, 6
      %s22 = sphi 0, %s24
      %s25 = sphi 0, %s22
      %s26 = sphi 0, %s25
      %s42 = sphi 0, %s26
      %s46 = sphi 0, %s46
      %s48 = sphi 0, %s46
      %s49 = sphi 0, %s48
      %s63 = sphi 0, %s49
      %s67 = sphi 0, %s67
      %s69 = sphi 0, %s67
      %s70 = sphi 0, %s69
      %s84 = sphi 0, %s70
      %s90 = sphi 0, %s92
      %s93 = sphi 0, %s90
      %s94 = sphi 0, %s93
      %s110 = sphi 0, %s94
    $region4: #{tpu_custom_call.1} parent=1 // loop_header_branch
      %15 = sbr.rel (%p13) target = $region8
    $region5: #{tpu_custom_call.1} parent=1 // loop_body
      %s17 = ssub.s32 %s12, 1
      %s18 = ssub.s32 %s12, 2
      %s19 = sadd.s32 %s12, 1
      %s20 = ssub.s32 %s12, %s19
      %p21 = scmp.eq.s32.totalorder %s20, 0
      %s23 = sadd.s32 %s22, 1
      %s24 = scalar_select %p21, %s22, %s23
      %p27 = pneg %p21
      %p28 = scmp.eq.s32.totalorder %s12, 3
      %p29 = por %p27, %p28
      %p30 = scmp.ne.s32.totalorder %s22, %s25
      %p31 = scmp.eq.s32.totalorder %s12, 0
      %p32 = por %p30, %p31
      %p33 = scmp.ne.s32.totalorder %s22, %s25
      %p34 = scmp.eq.s32.totalorder %s17, 3
      %p35 = por %p33, %p34
      %p36 = scmp.ne.s32.totalorder %s25, %s26
      %p37 = scmp.eq.s32.totalorder %s17, 0
      %p38 = por %p36, %p37
      %p39 = scmp.ne.s32.totalorder %s25, %s26
      %p40 = scmp.eq.s32.totalorder %s18, 3
      %p41 = por %p39, %p40
      %p43 = scmp.ne.s32.totalorder %s26, %s42
      %p44 = scmp.eq.s32.totalorder %s18, 0
      %p45 = por %p43, %p44
      %s47 = sadd.s32 %s46, 1
      %p50 = scmp.eq.s32.totalorder %s12, 3
      %p51 = scmp.ne.s32.totalorder %s46, %s48
      %p52 = scmp.eq.s32.totalorder %s12, 0
      %p53 = por %p51, %p52
      %p54 = scmp.ne.s32.totalorder %s46, %s48
      %p55 = scmp.eq.s32.totalorder %s17, 3
      %p56 = por %p54, %p55
      %p57 = scmp.ne.s32.totalorder %s48, %s49
      %p58 = scmp.eq.s32.totalorder %s17, 0
      %p59 = por %p57, %p58
      %p60 = scmp.ne.s32.totalorder %s48, %s49
      %p61 = scmp.eq.s32.totalorder %s18, 3
      %p62 = por %p60, %p61
      %p64 = scmp.ne.s32.totalorder %s49, %s63
      %p65 = scmp.eq.s32.totalorder %s18, 0
      %p66 = por %p64, %p65
      %s68 = sadd.s32 %s67, 1
      %p71 = scmp.eq.s32.totalorder %s12, 3
      %p72 = scmp.ne.s32.totalorder %s67, %s69
      %p73 = scmp.eq.s32.totalorder %s12, 0
      %p74 = por %p72, %p73
      %p75 = scmp.ne.s32.totalorder %s67, %s69
      %p76 = scmp.eq.s32.totalorder %s17, 3
      %p77 = por %p75, %p76
      %p78 = scmp.ne.s32.totalorder %s69, %s70
      %p79 = scmp.eq.s32.totalorder %s17, 0
      %p80 = por %p78, %p79
      %p81 = scmp.ne.s32.totalorder %s69, %s70
      %p82 = scmp.eq.s32.totalorder %s18, 3
      %p83 = por %p81, %p82
      %p85 = scmp.ne.s32.totalorder %s70, %s84
      %p86 = scmp.eq.s32.totalorder %s18, 0
      %p87 = por %p85, %p86
      %s88 = ssub.s32 %s12, %s19
      %p89 = scmp.eq.s32.totalorder %s88, 0
      %s91 = sadd.s32 %s90, 1
      %s92 = scalar_select %p89, %s90, %s91
      %p95 = pneg %p89
      %p96 = scmp.eq.s32.totalorder %s12, 3
      %p97 = por %p95, %p96
      %p98 = scmp.ne.s32.totalorder %s90, %s93
      %p99 = scmp.eq.s32.totalorder %s12, 0
      %p100 = por %p98, %p99
      %p101 = scmp.ne.s32.totalorder %s90, %s93
      %p102 = scmp.eq.s32.totalorder %s17, 3
      %p103 = por %p101, %p102
      %p104 = scmp.ne.s32.totalorder %s93, %s94
      %p105 = scmp.eq.s32.totalorder %s17, 0
      %p106 = por %p104, %p105
      %p107 = scmp.ne.s32.totalorder %s93, %s94
      %p108 = scmp.eq.s32.totalorder %s18, 3
      %p109 = por %p107, %p108
      %p111 = scmp.ne.s32.totalorder %s94, %s110
      %p112 = scmp.eq.s32.totalorder %s18, 0
      %p113 = por %p111, %p112
      %p114 = scmp.le.s32.totalorder 1, %s12
      %p115 = scmp.lt.s32.totalorder %s12, 5
      %p116 = pnand %p114, %p115
      %p117 = pneg %p116
      // Predicated region
      $region9: #{tpu_custom_call.1} parent=5 // pred_check
        _
      $region10: #{tpu_custom_call.1} parent=5 // pred_check_branch
        %119 = sbr.rel (%p116) target = $region12
      $region11: #{tpu_custom_call.1} parent=5 // pred_region
        %s120 = ssub.s32 %s12, 1
        // Predicated region
        $region13: #{tpu_custom_call.1} parent=11 // pred_check
          %p121 = pneg %p59
        $region14: #{tpu_custom_call.1} parent=11 // pred_check_branch
          %123 = sbr.rel (%p121) target = $region16
        $region15: #{tpu_custom_call.1} parent=11 // pred_region
          _
        $region16: #{tpu_custom_call.1} parent=11 // pred_fallthru
          _
        // Predicated region
        $region17: #{tpu_custom_call.1} parent=11 // pred_check
          %p124 = pneg %p80
        $region18: #{tpu_custom_call.1} parent=11 // pred_check_branch
          %126 = sbr.rel (%p124) target = $region20
        $region19: #{tpu_custom_call.1} parent=11 // pred_region
          _
        $region20: #{tpu_custom_call.1} parent=11 // pred_fallthru
          _
      $region12: #{tpu_custom_call.1} parent=5 // pred_fallthru
        _
      %p127 = scmp.lt.s32.totalorder %s12, 4
      // Predicated region
      $region21: #{tpu_custom_call.1} parent=5 // pred_check
        %p128 = pneg %p127
      $region22: #{tpu_custom_call.1} parent=5 // pred_check_branch
        %130 = sbr.rel (%p128) target = $region24
      $region23: #{tpu_custom_call.1} parent=5 // pred_region
        // Predicated region
        $region25: #{tpu_custom_call.1} parent=23 // pred_check
          %p131 = pneg %p32
        $region26: #{tpu_custom_call.1} parent=23 // pred_check_branch
          %133 = sbr.rel (%p131) target = $region28
        $region27: #{tpu_custom_call.1} parent=23 // pred_region
          %s134 = smul.u32 96, %s12
          %s135 = ssub.s32 375, %s134
          %p136 = scmp.lt.s32.totalorder %s135, 96
          %s137 = scalar_select %p136, %s135, 96
          %s138 = smul.u32 8, %s137
          %p139 = scmp.lt.s32.totalorder %s134, 374
          %s140 = scalar_select %p139, %s134, 374
          %s141 = smul.addr %s140, 8
          %s142 = scalar_lea.vmem %s0, %s141
          %s143 = smul.u32 96, %s12
          %s144 = ssub.s32 375, %s143
          %p145 = scmp.lt.s32.totalorder %s144, 96
          %s146 = scalar_select %p145, %s144, 96
          %s147 = smul.u32 8, %s146
        $region28: #{tpu_custom_call.1} parent=23 // pred_fallthru
          _
      $region24: #{tpu_custom_call.1} parent=5 // pred_fallthru
        _
      %p148 = scmp.le.s32.totalorder 1, %s12
      %p149 = scmp.lt.s32.totalorder %s12, 5
      %p150 = pnand %p148, %p149
      %p151 = pneg %p150
      // Predicated region
      $region29: #{tpu_custom_call.1} parent=5 // pred_check
        _
      $region30: #{tpu_custom_call.1} parent=5 // pred_check_branch
        %153 = sbr.rel (%p150) target = $region32
      $region31: #{tpu_custom_call.1} parent=5 // pred_region
        %s154 = ssub.s32 %s12, 1
        %s155 = smul.u32 96, %s17
        %s156 = ssub.s32 375, %s155
        %p157 = scmp.lt.s32.totalorder %s156, 96
        %s158 = scalar_select %p157, %s156, 96
        %s159 = smul.u32 8, %s158
        %p160 = scmp.lt.s32.totalorder %s155, 374
        %s161 = scalar_select %p160, %s155, 374
        %s162 = smul.addr %s161, 8
        %s163 = scalar_lea.vmem %s0, %s162
        %p164 = pneg %p38
        %p165 = pneg %p35
        %p166 = pneg %p59
        %p167 = pneg %p56
        %p168 = pneg %p80
        %p169 = pneg %p77
        %p170 = pneg %p106
        %p171 = pneg %p103
        %s172 = sand.u32 %s93, 1
        %s173 = scalar_lea.sflag [#allocation3], %s172
        %s174 = sand.u32 %s93, 1
        %s175 = smul.addr %s174, 6
        %s176 = scalar_lea.vmem [#allocation2], %s175
        %s177 = smul.u32 96, %s17
        %s178 = ssub.s32 375, %s177
        %p179 = scmp.lt.s32.totalorder %s178, 96
        %s180 = scalar_select %p179, %s178, 96
        %s181 = smul.u32 8, %s180
        %p182 = scmp.lt.s32.totalorder %s177, 374
        %s183 = scalar_select %p182, %s177, 374
        %s184 = smul.addr %s183, 8
        %s185 = scalar_lea.vmem %s0, %s184
        %s186 = smul.u32 96, %s17
        %s187 = ssub.s32 375, %s186
        %p188 = scmp.lt.s32.totalorder %s187, 96
        %s189 = scalar_select %p188, %s187, 96
        %s190 = smul.u32 8, %s189
        %s191 = smul.u32 6, %s17
        %v192 = vld [vmem:[%s1] sm:$0xff]
        %v193 = vld [vmem:[%s1 + $0x8] sm:$0xff]
        %v194 = vld [vmem:[%s1 + $0x10] sm:$0xff]
        %v195 = vld [vmem:[%s1 + $0x18] sm:$0xff]
        %v196 = vld [vmem:[%s1 + $0x20] sm:$0xff]
        %v197 = vld [vmem:[%s1 + $0x28] sm:$0xff]
        %v198 = vld [vmem:[%s1 + $0x30] sm:$0xff]
        %v199 = vld [vmem:[%s1 + $0x38] sm:$0xff]
        %v200 = vld [vmem:[%s1 + $0x40] sm:$0xff]
        %v201 = vld [vmem:[%s1 + $0x48] sm:$0xff]
        %v202 = vld [vmem:[%s185] sm:$0xff]
        %v203 = vld [vmem:[%s185 + $0x8] sm:$0xff]
        %v204 = vld [vmem:[%s185 + $0x10] sm:$0xff]
        %v205 = vld [vmem:[%s185 + $0x18] sm:$0xff]
        %v206 = vld [vmem:[%s185 + $0x20] sm:$0xff]
        %v207 = vld [vmem:[%s185 + $0x28] sm:$0xff]
        %v208 = vld [vmem:[%s185 + $0x30] sm:$0xff]
        %v209 = vld [vmem:[%s185 + $0x38] sm:$0xff]
        %v210 = vld [vmem:[%s185 + $0x40] sm:$0xff]
        %v211 = vld [vmem:[%s185 + $0x48] sm:$0xff]
        %v212 = vld [vmem:[%s185 + $0x50] sm:$0xff]
        %v213 = vld [vmem:[%s185 + $0x58] sm:$0xff]
        %v214 = vld [vmem:[%s185 + $0x60] sm:$0xff]
        %v215 = vld [vmem:[%s185 + $0x68] sm:$0xff]
        %v216 = vld [vmem:[%s185 + $0x70] sm:$0xff]
        %v217 = vld [vmem:[%s185 + $0x78] sm:$0xff]
        %v218 = vld [vmem:[%s185 + $0x80] sm:$0xff]
        %v219 = vld [vmem:[%s185 + $0x88] sm:$0xff]
        %v220 = vld [vmem:[%s185 + $0x90] sm:$0xff]
        %v221 = vld [vmem:[%s185 + $0x98] sm:$0xff]
        %v222 = vld [vmem:[%s185 + $0xa0] sm:$0xff]
        %v223 = vld [vmem:[%s185 + $0xa8] sm:$0xff]
        %v224 = vld [vmem:[%s185 + $0xb0] sm:$0xff]
        %v225 = vld [vmem:[%s185 + $0xb8] sm:$0xff]
        %v226 = vld [vmem:[%s185 + $0xc0] sm:$0xff]
        %v227 = vld [vmem:[%s185 + $0xc8] sm:$0xff]
        %v228 = vld [vmem:[%s185 + $0xd0] sm:$0xff]
        %v229 = vld [vmem:[%s185 + $0xd8] sm:$0xff]
        %v230 = vld [vmem:[%s185 + $0xe0] sm:$0xff]
        %v231 = vld [vmem:[%s185 + $0xe8] sm:$0xff]
        %v232 = vld [vmem:[%s185 + $0xf0] sm:$0xff]
        %v233 = vld [vmem:[%s185 + $0xf8] sm:$0xff]
        %v234 = vld [vmem:[%s185 + $0x100] sm:$0xff]
        %v235 = vld [vmem:[%s185 + $0x108] sm:$0xff]
        %v236 = vld [vmem:[%s185 + $0x110] sm:$0xff]
        %v237 = vld [vmem:[%s185 + $0x118] sm:$0xff]
        %v238 = vld [vmem:[%s185 + $0x120] sm:$0xff]
        %v239 = vld [vmem:[%s185 + $0x128] sm:$0xff]
        %v240 = vld [vmem:[%s185 + $0x130] sm:$0xff]
        %v241 = vld [vmem:[%s185 + $0x138] sm:$0xff]
        %v242 = vld [vmem:[%s185 + $0x140] sm:$0xff]
        %v243 = vld [vmem:[%s185 + $0x148] sm:$0xff]
        %v244 = vld [vmem:[%s185 + $0x150] sm:$0xff]
        %v245 = vld [vmem:[%s185 + $0x158] sm:$0xff]
        %v246 = vld [vmem:[%s185 + $0x160] sm:$0xff]
        %v247 = vld [vmem:[%s185 + $0x168] sm:$0xff]
        %v248 = vld [vmem:[%s185 + $0x170] sm:$0xff]
        %v249 = vld [vmem:[%s185 + $0x178] sm:$0xff]
        %v250 = vld [vmem:[%s185 + $0x180] sm:$0xff]
        %v251 = vld [vmem:[%s185 + $0x188] sm:$0xff]
        %v252 = vld [vmem:[%s185 + $0x190] sm:$0xff]
        %v253 = vld [vmem:[%s185 + $0x198] sm:$0xff]
        %v254 = vld [vmem:[%s185 + $0x1a0] sm:$0xff]
        %v255 = vld [vmem:[%s185 + $0x1a8] sm:$0xff]
        %v256 = vld [vmem:[%s185 + $0x1b0] sm:$0xff]
        %v257 = vld [vmem:[%s185 + $0x1b8] sm:$0xff]
        %v258 = vld [vmem:[%s185 + $0x1c0] sm:$0xff]
        %v259 = vld [vmem:[%s185 + $0x1c8] sm:$0xff]
        %v260 = vld [vmem:[%s185 + $0x1d0] sm:$0xff]
        %v261 = vld [vmem:[%s185 + $0x1d8] sm:$0xff]
        %v262 = vld [vmem:[%s185 + $0x1e0] sm:$0xff]
        %v263 = vld [vmem:[%s185 + $0x1e8] sm:$0xff]
        %v264 = vld [vmem:[%s185 + $0x1f0] sm:$0xff]
        %v265 = vld [vmem:[%s185 + $0x1f8] sm:$0xff]
        %v266 = vld [vmem:[%s185 + $0x200] sm:$0xff]
        %v267 = vld [vmem:[%s185 + $0x208] sm:$0xff]
        %v268 = vld [vmem:[%s185 + $0x210] sm:$0xff]
        %v269 = vld [vmem:[%s185 + $0x218] sm:$0xff]
        %v270 = vld [vmem:[%s185 + $0x220] sm:$0xff]
        %v271 = vld [vmem:[%s185 + $0x228] sm:$0xff]
        %v272 = vld [vmem:[%s185 + $0x230] sm:$0xff]
        %v273 = vld [vmem:[%s185 + $0x238] sm:$0xff]
        %v274 = vld [vmem:[%s185 + $0x240] sm:$0xff]
        %v275 = vld [vmem:[%s185 + $0x248] sm:$0xff]
        %v276 = vld [vmem:[%s185 + $0x250] sm:$0xff]
        %v277 = vld [vmem:[%s185 + $0x258] sm:$0xff]
        %v278 = vld [vmem:[%s185 + $0x260] sm:$0xff]
        %v279 = vld [vmem:[%s185 + $0x268] sm:$0xff]
        %v280 = vld [vmem:[%s185 + $0x270] sm:$0xff]
        %v281 = vld [vmem:[%s185 + $0x278] sm:$0xff]
        %v282 = vld [vmem:[%s185 + $0x280] sm:$0xff]
        %v283 = vld [vmem:[%s185 + $0x288] sm:$0xff]
        %v284 = vld [vmem:[%s185 + $0x290] sm:$0xff]
        %v285 = vld [vmem:[%s185 + $0x298] sm:$0xff]
        %v286 = vld [vmem:[%s185 + $0x2a0] sm:$0xff]
        %v287 = vld [vmem:[%s185 + $0x2a8] sm:$0xff]
        %v288 = vld [vmem:[%s185 + $0x2b0] sm:$0xff]
        %v289 = vld [vmem:[%s185 + $0x2b8] sm:$0xff]
        %v290 = vld [vmem:[%s185 + $0x2c0] sm:$0xff]
        %v291 = vld [vmem:[%s185 + $0x2c8] sm:$0xff]
        %v292 = vld [vmem:[%s185 + $0x2d0] sm:$0xff]
        %v293 = vld [vmem:[%s185 + $0x2d8] sm:$0xff]
        %v294 = vld [vmem:[%s185 + $0x2e0] sm:$0xff]
        %v295 = vld [vmem:[%s185 + $0x2e8] sm:$0xff]
        %v296 = vld [vmem:[%s185 + $0x2f0] sm:$0xff]
        %v297 = vld [vmem:[%s185 + $0x2f8] sm:$0xff]
        %vm298 = vcmask 326656
        %v300 = vsel %vm298, %v192, 0
        %v303 = vsel %vm298, %v193, 0
        %v306 = vsel %vm298, %v194, 0
        %v309 = vsel %vm298, %v195, 0
        %v312 = vsel %vm298, %v196, 0
        %v315 = vsel %vm298, %v197, 0
        %v318 = vsel %vm298, %v198, 0
        %v321 = vsel %vm298, %v199, 0
        %v324 = vsel %vm298, %v200, 0
        %v327 = vsel %vm298, %v201, 0
        %v330 = vsel %vm298, %v202, 0
        %v333 = vsel %vm298, %v203, 0
        %v336 = vsel %vm298, %v204, 0
        %v339 = vsel %vm298, %v205, 0
        %v342 = vsel %vm298, %v206, 0
        %v345 = vsel %vm298, %v207, 0
        %v348 = vsel %vm298, %v208, 0
        %v351 = vsel %vm298, %v209, 0
        %v354 = vsel %vm298, %v210, 0
        %v357 = vsel %vm298, %v211, 0
        %v360 = vsel %vm298, %v212, 0
        %v363 = vsel %vm298, %v213, 0
        %v366 = vsel %vm298, %v214, 0
        %v369 = vsel %vm298, %v215, 0
        %v372 = vsel %vm298, %v216, 0
        %v375 = vsel %vm298, %v217, 0
        %v378 = vsel %vm298, %v218, 0
        %v381 = vsel %vm298, %v219, 0
        %v384 = vsel %vm298, %v220, 0
        %v387 = vsel %vm298, %v221, 0
        %v390 = vsel %vm298, %v222, 0
        %v393 = vsel %vm298, %v223, 0
        %v396 = vsel %vm298, %v224, 0
        %v399 = vsel %vm298, %v225, 0
        %v402 = vsel %vm298, %v226, 0
        %v405 = vsel %vm298, %v227, 0
        %v408 = vsel %vm298, %v228, 0
        %v411 = vsel %vm298, %v229, 0
        %v414 = vsel %vm298, %v230, 0
        %v417 = vsel %vm298, %v231, 0
        %v420 = vsel %vm298, %v232, 0
        %v423 = vsel %vm298, %v233, 0
        %v426 = vsel %vm298, %v234, 0
        %v429 = vsel %vm298, %v235, 0
        %v432 = vsel %vm298, %v236, 0
        %v435 = vsel %vm298, %v237, 0
        %v438 = vsel %vm298, %v238, 0
        %v441 = vsel %vm298, %v239, 0
        %v444 = vsel %vm298, %v240, 0
        %v447 = vsel %vm298, %v241, 0
        %v450 = vsel %vm298, %v242, 0
        %v453 = vsel %vm298, %v243, 0
        %v456 = vsel %vm298, %v244, 0
        %v459 = vsel %vm298, %v245, 0
        %v462 = vsel %vm298, %v246, 0
        %v465 = vsel %vm298, %v247, 0
        %v468 = vsel %vm298, %v248, 0
        %v471 = vsel %vm298, %v249, 0
        %v474 = vsel %vm298, %v250, 0
        %v477 = vsel %vm298, %v251, 0
        %v480 = vsel %vm298, %v252, 0
        %v483 = vsel %vm298, %v253, 0
        %v486 = vsel %vm298, %v254, 0
        %v489 = vsel %vm298, %v255, 0
        %v492 = vsel %vm298, %v256, 0
        %v495 = vsel %vm298, %v257, 0
        %v498 = vsel %vm298, %v258, 0
        %v501 = vsel %vm298, %v259, 0
        %v504 = vsel %vm298, %v260, 0
        %v507 = vsel %vm298, %v261, 0
        %v510 = vsel %vm298, %v262, 0
        %v513 = vsel %vm298, %v263, 0
        %v516 = vsel %vm298, %v264, 0
        %v519 = vsel %vm298, %v265, 0
        %v522 = vsel %vm298, %v266, 0
        %v525 = vsel %vm298, %v267, 0
        %v528 = vsel %vm298, %v268, 0
        %v531 = vsel %vm298, %v269, 0
        %v534 = vsel %vm298, %v270, 0
        %v537 = vsel %vm298, %v271, 0
        %v540 = vsel %vm298, %v272, 0
        %v543 = vsel %vm298, %v273, 0
        %v546 = vsel %vm298, %v274, 0
        %v549 = vsel %vm298, %v275, 0
        %v552 = vsel %vm298, %v276, 0
        %v555 = vsel %vm298, %v277, 0
        %v558 = vsel %vm298, %v278, 0
        %v561 = vsel %vm298, %v279, 0
        %v564 = vsel %vm298, %v280, 0
        %v567 = vsel %vm298, %v281, 0
        %v570 = vsel %vm298, %v282, 0
        %v573 = vsel %vm298, %v283, 0
        %v576 = vsel %vm298, %v284, 0
        %v579 = vsel %vm298, %v285, 0
        %v582 = vsel %vm298, %v286, 0
        %v585 = vsel %vm298, %v287, 0
        %v588 = vsel %vm298, %v288, 0
        %v591 = vsel %vm298, %v289, 0
        %v594 = vsel %vm298, %v290, 0
        %v597 = vsel %vm298, %v291, 0
        %v600 = vsel %vm298, %v292, 0
        %v603 = vsel %vm298, %v293, 0
        %v606 = vsel %vm298, %v294, 0
        %v609 = vsel %vm298, %v295, 0
        %v612 = vsel %vm298, %v296, 0
        %v615 = vsel %vm298, %v297, 0
        %617 = vmatpush.xpose.msra.mxu0 %v375
        %618 = vmatpush.xpose.msra.mxu0 %v372
        %619 = vmatpush.xpose.msra.mxu0 %v369
        %620 = vmatpush.xpose.msra.mxu0 %v366
        %621 = vmatpush.xpose.msra.mxu0 %v363
        %622 = vmatpush.xpose.msra.mxu0 %v360
        %623 = vmatpush.xpose.msra.mxu0 %v357
        %624 = vmatpush.xpose.msra.mxu0 %v354
        %625 = vmatpush.xpose.msra.mxu0 %v351
        %626 = vmatpush.xpose.msra.mxu0 %v348
        %627 = vmatpush.xpose.msra.mxu0 %v345
        %628 = vmatpush.xpose.msra.mxu0 %v342
        %629 = vmatpush.xpose.msra.mxu0 %v339
        %630 = vmatpush.xpose.msra.mxu0 %v336
        %631 = vmatpush.xpose.msra.mxu0 %v333
        %632 = vmatpush.xpose.msra.mxu0 %v330
        %633 = vmatmul.f32.gmra.mxu0 %v300
        %v634 = vpop.f32.mrf.mxu0
        %v635 = vadd.f32 0.0, %v634
        %636 = vmatmul.f32.gmra.mxu0 %v303
        %v637 = vpop.f32.mrf.mxu0
        %v638 = vadd.f32 0.0, %v637
        %639 = vmatmul.f32.gmra.mxu0 %v306
        %v640 = vpop.f32.mrf.mxu0
        %v641 = vadd.f32 0.0, %v640
        %642 = vmatmul.f32.gmra.mxu0 %v309
        %v643 = vpop.f32.mrf.mxu0
        %v644 = vadd.f32 0.0, %v643
        %645 = vmatmul.f32.gmra.mxu0 %v312
        %v646 = vpop.f32.mrf.mxu0
        %v647 = vadd.f32 0.0, %v646
        %648 = vmatmul.f32.gmra.mxu0 %v315
        %v649 = vpop.f32.mrf.mxu0
        %v650 = vadd.f32 0.0, %v649
        %651 = vmatmul.f32.gmra.mxu0 %v318
        %v652 = vpop.f32.mrf.mxu0
        %v653 = vadd.f32 0.0, %v652
        %654 = vmatmul.f32.gmra.mxu0 %v321
        %v655 = vpop.f32.mrf.mxu0
        %v656 = vadd.f32 0.0, %v655
        %657 = vmatmul.f32.gmra.mxu0 %v324
        %v658 = vpop.f32.mrf.mxu0
        %v659 = vadd.f32 0.0, %v658
        %660 = vmatmul.f32.gmra.mxu0 %v327
        %v661 = vpop.f32.mrf.mxu0
        %v662 = vadd.f32 0.0, %v661
        %663 = vdwg.mxu0
        %664 = vmatpush.xpose.msra.mxu0 %v423
        %665 = vmatpush.xpose.msra.mxu0 %v420
        %666 = vmatpush.xpose.msra.mxu0 %v417
        %667 = vmatpush.xpose.msra.mxu0 %v414
        %668 = vmatpush.xpose.msra.mxu0 %v411
        %669 = vmatpush.xpose.msra.mxu0 %v408
        %670 = vmatpush.xpose.msra.mxu0 %v405
        %671 = vmatpush.xpose.msra.mxu0 %v402
        %672 = vmatpush.xpose.msra.mxu0 %v399
        %673 = vmatpush.xpose.msra.mxu0 %v396
        %674 = vmatpush.xpose.msra.mxu0 %v393
        %675 = vmatpush.xpose.msra.mxu0 %v390
        %676 = vmatpush.xpose.msra.mxu0 %v387
        %677 = vmatpush.xpose.msra.mxu0 %v384
        %678 = vmatpush.xpose.msra.mxu0 %v381
        %679 = vmatpush.xpose.msra.mxu0 %v378
        %680 = vmatmul.f32.gmra.mxu0 %v300
        %v681 = vpop.f32.mrf.mxu0
        %v682 = vadd.f32 0.0, %v681
        %683 = vmatmul.f32.gmra.mxu0 %v303
        %v684 = vpop.f32.mrf.mxu0
        %v685 = vadd.f32 0.0, %v684
        %686 = vmatmul.f32.gmra.mxu0 %v306
        %v687 = vpop.f32.mrf.mxu0
        %v688 = vadd.f32 0.0, %v687
        %689 = vmatmul.f32.gmra.mxu0 %v309
        %v690 = vpop.f32.mrf.mxu0
        %v691 = vadd.f32 0.0, %v690
        %692 = vmatmul.f32.gmra.mxu0 %v312
        %v693 = vpop.f32.mrf.mxu0
        %v694 = vadd.f32 0.0, %v693
        %695 = vmatmul.f32.gmra.mxu0 %v315
        %v696 = vpop.f32.mrf.mxu0
        %v697 = vadd.f32 0.0, %v696
        %698 = vmatmul.f32.gmra.mxu0 %v318
        %v699 = vpop.f32.mrf.mxu0
        %v700 = vadd.f32 0.0, %v699
        %701 = vmatmul.f32.gmra.mxu0 %v321
        %v702 = vpop.f32.mrf.mxu0
        %v703 = vadd.f32 0.0, %v702
        %704 = vmatmul.f32.gmra.mxu0 %v324
        %v705 = vpop.f32.mrf.mxu0
        %v706 = vadd.f32 0.0, %v705
        %707 = vmatmul.f32.gmra.mxu0 %v327
        %v708 = vpop.f32.mrf.mxu0
        %v709 = vadd.f32 0.0, %v708
        %710 = vdwg.mxu0
        %711 = vmatpush.xpose.msra.mxu0 %v471
        %712 = vmatpush.xpose.msra.mxu0 %v468
        %713 = vmatpush.xpose.msra.mxu0 %v465
        %714 = vmatpush.xpose.msra.mxu0 %v462
        %715 = vmatpush.xpose.msra.mxu0 %v459
        %716 = vmatpush.xpose.msra.mxu0 %v456
        %717 = vmatpush.xpose.msra.mxu0 %v453
        %718 = vmatpush.xpose.msra.mxu0 %v450
        %719 = vmatpush.xpose.msra.mxu0 %v447
        %720 = vmatpush.xpose.msra.mxu0 %v444
        %721 = vmatpush.xpose.msra.mxu0 %v441
        %722 = vmatpush.xpose.msra.mxu0 %v438
        %723 = vmatpush.xpose.msra.mxu0 %v435
        %724 = vmatpush.xpose.msra.mxu0 %v432
        %725 = vmatpush.xpose.msra.mxu0 %v429
        %726 = vmatpush.xpose.msra.mxu0 %v426
        %727 = vmatmul.f32.gmra.mxu0 %v300
        %v728 = vpop.f32.mrf.mxu0
        %v729 = vadd.f32 0.0, %v728
        %730 = vmatmul.f32.gmra.mxu0 %v303
        %v731 = vpop.f32.mrf.mxu0
        %v732 = vadd.f32 0.0, %v731
        %733 = vmatmul.f32.gmra.mxu0 %v306
        %v734 = vpop.f32.mrf.mxu0
        %v735 = vadd.f32 0.0, %v734
        %736 = vmatmul.f32.gmra.mxu0 %v309
        %v737 = vpop.f32.mrf.mxu0
        %v738 = vadd.f32 0.0, %v737
        %739 = vmatmul.f32.gmra.mxu0 %v312
        %v740 = vpop.f32.mrf.mxu0
        %v741 = vadd.f32 0.0, %v740
        %742 = vmatmul.f32.gmra.mxu0 %v315
        %v743 = vpop.f32.mrf.mxu0
        %v744 = vadd.f32 0.0, %v743
        %745 = vmatmul.f32.gmra.mxu0 %v318
        %v746 = vpop.f32.mrf.mxu0
        %v747 = vadd.f32 0.0, %v746
        %748 = vmatmul.f32.gmra.mxu0 %v321
        %v749 = vpop.f32.mrf.mxu0
        %v750 = vadd.f32 0.0, %v749
        %751 = vmatmul.f32.gmra.mxu0 %v324
        %v752 = vpop.f32.mrf.mxu0
        %v753 = vadd.f32 0.0, %v752
        %754 = vmatmul.f32.gmra.mxu0 %v327
        %v755 = vpop.f32.mrf.mxu0
        %v756 = vadd.f32 0.0, %v755
        %757 = vdwg.mxu0
        %758 = vmatpush.xpose.msra.mxu0 %v519
        %759 = vmatpush.xpose.msra.mxu0 %v516
        %760 = vmatpush.xpose.msra.mxu0 %v513
        %761 = vmatpush.xpose.msra.mxu0 %v510
        %762 = vmatpush.xpose.msra.mxu0 %v507
        %763 = vmatpush.xpose.msra.mxu0 %v504
        %764 = vmatpush.xpose.msra.mxu0 %v501
        %765 = vmatpush.xpose.msra.mxu0 %v498
        %766 = vmatpush.xpose.msra.mxu0 %v495
        %767 = vmatpush.xpose.msra.mxu0 %v492
        %768 = vmatpush.xpose.msra.mxu0 %v489
        %769 = vmatpush.xpose.msra.mxu0 %v486
        %770 = vmatpush.xpose.msra.mxu0 %v483
        %771 = vmatpush.xpose.msra.mxu0 %v480
        %772 = vmatpush.xpose.msra.mxu0 %v477
        %773 = vmatpush.xpose.msra.mxu0 %v474
        %774 = vmatmul.f32.gmra.mxu0 %v300
        %v775 = vpop.f32.mrf.mxu0
        %v776 = vadd.f32 0.0, %v775
        %777 = vmatmul.f32.gmra.mxu0 %v303
        %v778 = vpop.f32.mrf.mxu0
        %v779 = vadd.f32 0.0, %v778
        %780 = vmatmul.f32.gmra.mxu0 %v306
        %v781 = vpop.f32.mrf.mxu0
        %v782 = vadd.f32 0.0, %v781
        %783 = vmatmul.f32.gmra.mxu0 %v309
        %v784 = vpop.f32.mrf.mxu0
        %v785 = vadd.f32 0.0, %v784
        %786 = vmatmul.f32.gmra.mxu0 %v312
        %v787 = vpop.f32.mrf.mxu0
        %v788 = vadd.f32 0.0, %v787
        %789 = vmatmul.f32.gmra.mxu0 %v315
        %v790 = vpop.f32.mrf.mxu0
        %v791 = vadd.f32 0.0, %v790
        %792 = vmatmul.f32.gmra.mxu0 %v318
        %v793 = vpop.f32.mrf.mxu0
        %v794 = vadd.f32 0.0, %v793
        %795 = vmatmul.f32.gmra.mxu0 %v321
        %v796 = vpop.f32.mrf.mxu0
        %v797 = vadd.f32 0.0, %v796
        %798 = vmatmul.f32.gmra.mxu0 %v324
        %v799 = vpop.f32.mrf.mxu0
        %v800 = vadd.f32 0.0, %v799
        %801 = vmatmul.f32.gmra.mxu0 %v327
        %v802 = vpop.f32.mrf.mxu0
        %v803 = vadd.f32 0.0, %v802
        %804 = vdwg.mxu0
        %805 = vmatpush.xpose.msra.mxu0 %v567
        %806 = vmatpush.xpose.msra.mxu0 %v564
        %807 = vmatpush.xpose.msra.mxu0 %v561
        %808 = vmatpush.xpose.msra.mxu0 %v558
        %809 = vmatpush.xpose.msra.mxu0 %v555
        %810 = vmatpush.xpose.msra.mxu0 %v552
        %811 = vmatpush.xpose.msra.mxu0 %v549
        %812 = vmatpush.xpose.msra.mxu0 %v546
        %813 = vmatpush.xpose.msra.mxu0 %v543
        %814 = vmatpush.xpose.msra.mxu0 %v540
        %815 = vmatpush.xpose.msra.mxu0 %v537
        %816 = vmatpush.xpose.msra.mxu0 %v534
        %817 = vmatpush.xpose.msra.mxu0 %v531
        %818 = vmatpush.xpose.msra.mxu0 %v528
        %819 = vmatpush.xpose.msra.mxu0 %v525
        %820 = vmatpush.xpose.msra.mxu0 %v522
        %821 = vmatmul.f32.gmra.mxu0 %v300
        %v822 = vpop.f32.mrf.mxu0
        %v823 = vadd.f32 0.0, %v822
        %824 = vmatmul.f32.gmra.mxu0 %v303
        %v825 = vpop.f32.mrf.mxu0
        %v826 = vadd.f32 0.0, %v825
        %827 = vmatmul.f32.gmra.mxu0 %v306
        %v828 = vpop.f32.mrf.mxu0
        %v829 = vadd.f32 0.0, %v828
        %830 = vmatmul.f32.gmra.mxu0 %v309
        %v831 = vpop.f32.mrf.mxu0
        %v832 = vadd.f32 0.0, %v831
        %833 = vmatmul.f32.gmra.mxu0 %v312
        %v834 = vpop.f32.mrf.mxu0
        %v835 = vadd.f32 0.0, %v834
        %836 = vmatmul.f32.gmra.mxu0 %v315
        %v837 = vpop.f32.mrf.mxu0
        %v838 = vadd.f32 0.0, %v837
        %839 = vmatmul.f32.gmra.mxu0 %v318
        %v840 = vpop.f32.mrf.mxu0
        %v841 = vadd.f32 0.0, %v840
        %842 = vmatmul.f32.gmra.mxu0 %v321
        %v843 = vpop.f32.mrf.mxu0
        %v844 = vadd.f32 0.0, %v843
        %845 = vmatmul.f32.gmra.mxu0 %v324
        %v846 = vpop.f32.mrf.mxu0
        %v847 = vadd.f32 0.0, %v846
        %848 = vmatmul.f32.gmra.mxu0 %v327
        %v849 = vpop.f32.mrf.mxu0
        %v850 = vadd.f32 0.0, %v849
        %851 = vdwg.mxu0
        %852 = vmatpush.xpose.msra.mxu0 %v615
        %853 = vmatpush.xpose.msra.mxu0 %v612
        %854 = vmatpush.xpose.msra.mxu0 %v609
        %855 = vmatpush.xpose.msra.mxu0 %v606
        %856 = vmatpush.xpose.msra.mxu0 %v603
        %857 = vmatpush.xpose.msra.mxu0 %v600
        %858 = vmatpush.xpose.msra.mxu0 %v597
        %859 = vmatpush.xpose.msra.mxu0 %v594
        %860 = vmatpush.xpose.msra.mxu0 %v591
        %861 = vmatpush.xpose.msra.mxu0 %v588
        %862 = vmatpush.xpose.msra.mxu0 %v585
        %863 = vmatpush.xpose.msra.mxu0 %v582
        %864 = vmatpush.xpose.msra.mxu0 %v579
        %865 = vmatpush.xpose.msra.mxu0 %v576
        %866 = vmatpush.xpose.msra.mxu0 %v573
        %867 = vmatpush.xpose.msra.mxu0 %v570
        %868 = vmatmul.f32.gmra.mxu0 %v300
        %v869 = vpop.f32.mrf.mxu0
        %v870 = vadd.f32 0.0, %v869
        %871 = vmatmul.f32.gmra.mxu0 %v303
        %v872 = vpop.f32.mrf.mxu0
        %v873 = vadd.f32 0.0, %v872
        %874 = vmatmul.f32.gmra.mxu0 %v306
        %v875 = vpop.f32.mrf.mxu0
        %v876 = vadd.f32 0.0, %v875
        %877 = vmatmul.f32.gmra.mxu0 %v309
        %v878 = vpop.f32.mrf.mxu0
        %v879 = vadd.f32 0.0, %v878
        %880 = vmatmul.f32.gmra.mxu0 %v312
        %v881 = vpop.f32.mrf.mxu0
        %v882 = vadd.f32 0.0, %v881
        %883 = vmatmul.f32.gmra.mxu0 %v315
        %v884 = vpop.f32.mrf.mxu0
        %v885 = vadd.f32 0.0, %v884
        %886 = vmatmul.f32.gmra.mxu0 %v318
        %v887 = vpop.f32.mrf.mxu0
        %v888 = vadd.f32 0.0, %v887
        %889 = vmatmul.f32.gmra.mxu0 %v321
        %v890 = vpop.f32.mrf.mxu0
        %v891 = vadd.f32 0.0, %v890
        %892 = vmatmul.f32.gmra.mxu0 %v324
        %v893 = vpop.f32.mrf.mxu0
        %v894 = vadd.f32 0.0, %v893
        %895 = vmatmul.f32.gmra.mxu0 %v327
        %v896 = vpop.f32.mrf.mxu0
        %v897 = vadd.f32 0.0, %v896
        %898 = vdwg.mxu0
        %v899 = vtanh.pop %v635
        %v900 = vtanh.pop %v682
        %v901 = vtanh.pop %v729
        %v902 = vtanh.pop %v776
        %v903 = vtanh.pop %v823
        %v904 = vtanh.pop %v870
        %v905 = vtanh.pop %v638
        %v906 = vtanh.pop %v685
        %v907 = vtanh.pop %v732
        %v908 = vtanh.pop %v779
        %v909 = vtanh.pop %v826
        %v910 = vtanh.pop %v873
        %v911 = vtanh.pop %v641
        %v912 = vtanh.pop %v688
        %v913 = vtanh.pop %v735
        %v914 = vtanh.pop %v782
        %v915 = vtanh.pop %v829
        %v916 = vtanh.pop %v876
        %v917 = vtanh.pop %v644
        %v918 = vtanh.pop %v691
        %v919 = vtanh.pop %v738
        %v920 = vtanh.pop %v785
        %v921 = vtanh.pop %v832
        %v922 = vtanh.pop %v879
        %v923 = vtanh.pop %v647
        %v924 = vtanh.pop %v694
        %v925 = vtanh.pop %v741
        %v926 = vtanh.pop %v788
        %v927 = vtanh.pop %v835
        %v928 = vtanh.pop %v882
        %v929 = vtanh.pop %v650
        %v930 = vtanh.pop %v697
        %v931 = vtanh.pop %v744
        %v932 = vtanh.pop %v791
        %v933 = vtanh.pop %v838
        %v934 = vtanh.pop %v885
        %v935 = vtanh.pop %v653
        %v936 = vtanh.pop %v700
        %v937 = vtanh.pop %v747
        %v938 = vtanh.pop %v794
        %v939 = vtanh.pop %v841
        %v940 = vtanh.pop %v888
        %v941 = vtanh.pop %v656
        %v942 = vtanh.pop %v703
        %v943 = vtanh.pop %v750
        %v944 = vtanh.pop %v797
        %v945 = vtanh.pop %v844
        %v946 = vtanh.pop %v891
        %v947 = vtanh.pop %v659
        %v948 = vtanh.pop %v706
        %v949 = vtanh.pop %v753
        %v950 = vtanh.pop %v800
        %v951 = vtanh.pop %v847
        %v952 = vtanh.pop %v894
        %v953 = vtanh.pop %v662
        %v954 = vtanh.pop %v709
        %v955 = vtanh.pop %v756
        %v956 = vtanh.pop %v803
        %v957 = vtanh.pop %v850
        %v958 = vtanh.pop %v897
        %v959 = vld [vmem:[%s2] sm:$0x1]
        %vm960 = vcmask 654336
        %v962 = vsel %vm960, %v959, 0
        %964 = vmatpush.msra.mxu0 0.0
        %965 = vmatpush.msra.mxu0 0.0
        %966 = vmatpush.msra.mxu0 0.0
        %967 = vmatpush.msra.mxu0 0.0
        %968 = vmatpush.msra.mxu0 0.0
        %969 = vmatpush.msra.mxu0 0.0
        %970 = vmatpush.msra.mxu0 %v953
        %971 = vmatpush.msra.mxu0 %v947
        %972 = vmatpush.msra.mxu0 %v941
        %973 = vmatpush.msra.mxu0 %v935
        %974 = vmatpush.msra.mxu0 %v929
        %975 = vmatpush.msra.mxu0 %v923
        %976 = vmatpush.msra.mxu0 %v917
        %977 = vmatpush.msra.mxu0 %v911
        %978 = vmatpush.msra.mxu0 %v905
        %979 = vmatpush.msra.mxu0 %v899
        %980 = vmatmul.f32.gmra.mxu0 %v962
        %v981 = vpop.f32.mrf.mxu0
        %v982 = vadd.f32 0.0, %v981
        %983 = vdwg.mxu0
        %984 = vmatpush.msra.mxu0 0.0
        %985 = vmatpush.msra.mxu0 0.0
        %986 = vmatpush.msra.mxu0 0.0
        %987 = vmatpush.msra.mxu0 0.0
        %988 = vmatpush.msra.mxu0 0.0
        %989 = vmatpush.msra.mxu0 0.0
        %990 = vmatpush.msra.mxu0 %v954
        %991 = vmatpush.msra.mxu0 %v948
        %992 = vmatpush.msra.mxu0 %v942
        %993 = vmatpush.msra.mxu0 %v936
        %994 = vmatpush.msra.mxu0 %v930
        %995 = vmatpush.msra.mxu0 %v924
        %996 = vmatpush.msra.mxu0 %v918
        %997 = vmatpush.msra.mxu0 %v912
        %998 = vmatpush.msra.mxu0 %v906
        %999 = vmatpush.msra.mxu0 %v900
        %1000 = vmatmul.f32.gmra.mxu0 %v962
        %v1001 = vpop.f32.mrf.mxu0
        %v1002 = vadd.f32 0.0, %v1001
        %1003 = vdwg.mxu0
        %1004 = vmatpush.msra.mxu0 0.0
        %1005 = vmatpush.msra.mxu0 0.0
        %1006 = vmatpush.msra.mxu0 0.0
        %1007 = vmatpush.msra.mxu0 0.0
        %1008 = vmatpush.msra.mxu0 0.0
        %1009 = vmatpush.msra.mxu0 0.0
        %1010 = vmatpush.msra.mxu0 %v955
        %1011 = vmatpush.msra.mxu0 %v949
        %1012 = vmatpush.msra.mxu0 %v943
        %1013 = vmatpush.msra.mxu0 %v937
        %1014 = vmatpush.msra.mxu0 %v931
        %1015 = vmatpush.msra.mxu0 %v925
        %1016 = vmatpush.msra.mxu0 %v919
        %1017 = vmatpush.msra.mxu0 %v913
        %1018 = vmatpush.msra.mxu0 %v907
        %1019 = vmatpush.msra.mxu0 %v901
        %1020 = vmatmul.f32.gmra.mxu0 %v962
        %v1021 = vpop.f32.mrf.mxu0
        %v1022 = vadd.f32 0.0, %v1021
        %1023 = vdwg.mxu0
        %1024 = vmatpush.msra.mxu0 0.0
        %1025 = vmatpush.msra.mxu0 0.0
        %1026 = vmatpush.msra.mxu0 0.0
        %1027 = vmatpush.msra.mxu0 0.0
        %1028 = vmatpush.msra.mxu0 0.0
        %1029 = vmatpush.msra.mxu0 0.0
        %1030 = vmatpush.msra.mxu0 %v956
        %1031 = vmatpush.msra.mxu0 %v950
        %1032 = vmatpush.msra.mxu0 %v944
        %1033 = vmatpush.msra.mxu0 %v938
        %1034 = vmatpush.msra.mxu0 %v932
        %1035 = vmatpush.msra.mxu0 %v926
        %1036 = vmatpush.msra.mxu0 %v920
        %1037 = vmatpush.msra.mxu0 %v914
        %1038 = vmatpush.msra.mxu0 %v908
        %1039 = vmatpush.msra.mxu0 %v902
        %1040 = vmatmul.f32.gmra.mxu0 %v962
        %v1041 = vpop.f32.mrf.mxu0
        %v1042 = vadd.f32 0.0, %v1041
        %1043 = vdwg.mxu0
        %1044 = vmatpush.msra.mxu0 0.0
        %1045 = vmatpush.msra.mxu0 0.0
        %1046 = vmatpush.msra.mxu0 0.0
        %1047 = vmatpush.msra.mxu0 0.0
        %1048 = vmatpush.msra.mxu0 0.0
        %1049 = vmatpush.msra.mxu0 0.0
        %1050 = vmatpush.msra.mxu0 %v957
        %1051 = vmatpush.msra.mxu0 %v951
        %1052 = vmatpush.msra.mxu0 %v945
        %1053 = vmatpush.msra.mxu0 %v939
        %1054 = vmatpush.msra.mxu0 %v933
        %1055 = vmatpush.msra.mxu0 %v927
        %1056 = vmatpush.msra.mxu0 %v921
        %1057 = vmatpush.msra.mxu0 %v915
        %1058 = vmatpush.msra.mxu0 %v909
        %1059 = vmatpush.msra.mxu0 %v903
        %1060 = vmatmul.f32.gmra.mxu0 %v962
        %v1061 = vpop.f32.mrf.mxu0
        %v1062 = vadd.f32 0.0, %v1061
        %1063 = vdwg.mxu0
        %1064 = vmatpush.msra.mxu0 0.0
        %1065 = vmatpush.msra.mxu0 0.0
        %1066 = vmatpush.msra.mxu0 0.0
        %1067 = vmatpush.msra.mxu0 0.0
        %1068 = vmatpush.msra.mxu0 0.0
        %1069 = vmatpush.msra.mxu0 0.0
        %1070 = vmatpush.msra.mxu0 %v958
        %1071 = vmatpush.msra.mxu0 %v952
        %1072 = vmatpush.msra.mxu0 %v946
        %1073 = vmatpush.msra.mxu0 %v940
        %1074 = vmatpush.msra.mxu0 %v934
        %1075 = vmatpush.msra.mxu0 %v928
        %1076 = vmatpush.msra.mxu0 %v922
        %1077 = vmatpush.msra.mxu0 %v916
        %1078 = vmatpush.msra.mxu0 %v910
        %1079 = vmatpush.msra.mxu0 %v904
        %1080 = vmatmul.f32.gmra.mxu0 %v962
        %v1081 = vpop.f32.mrf.mxu0
        %v1082 = vadd.f32 0.0, %v1081
        %1083 = vdwg.mxu0
        %v1090 = vrot.slane %v1002, 7
        %v1091 = vrot.slane %v1022, 6
        %v1092 = vrot.slane %v1042, 5
        %v1093 = vrot.slane %v1062, 4
        %v1094 = vrot.slane %v1082, 3
        %vm1095 = vcmask 1040384
        %v1096 = vsel %vm1095, %v982, %v1090
        %vm1097 = vcmask 1041408
        %v1098 = vsel %vm1097, %v1096, %v1091
        %vm1099 = vcmask 1043459
        %v1100 = vsel %vm1099, %v1092, %v1093
        %vm1101 = vcmask 1044483
        %v1102 = vsel %vm1101, %v1100, %v1094
        %vm1103 = vcmask 1042432
        %v1104 = vsel %vm1103, %v1098, %v1102
        %v1106 = vlaneseq
        %vm1107 = vcmp.ge.s32.totalorder %v1106, 0
        %vm1108 = vcmp.lt.s32.totalorder %v1106, 768
        %vm1109 = vmand %vm1107, %vm1108
        %1110 = vst.msk [vmem:[%s176] sm:$0x3f] %vm1109, %v1104
        %s1111 = sand.u32 %s93, 1
        %s1112 = scalar_lea.sflag [#allocation3], %s1111
        %s1113 = sand.u32 %s93, 1
        %s1114 = smul.addr %s1113, 6
        %s1115 = scalar_lea.vmem [#allocation2], %s1114
        // Predicated region
        $region33: #{tpu_custom_call.1} parent=31 // pred_check
          %p1116 = pneg %p103
        $region34: #{tpu_custom_call.1} parent=31 // pred_check_branch
          %1118 = sbr.rel (%p1116) target = $region36
        $region35: #{tpu_custom_call.1} parent=31 // pred_region
          %s1119 = smul.u32 6, %s17
          %1121 = vsyncadd %s1112, 0
          %s1122 = scalar_lea.hbm %s3, %s1119
          %s1124 = sshll.u32 %s1115, 4
          %s1125 = int_to_ptr.vmem [resolvable:$true] %s1124
          %s1126 = sshll.u32 %s1122, 4
          %s1127 = int_to_ptr.hbm [resolvable:$true] %s1126
          %1129 = dma.vmem_to_hbm [thread:$0]  %s1125, 96, %s1127, %s1112
        $region36: #{tpu_custom_call.1} parent=31 // pred_fallthru
          _
      $region32: #{tpu_custom_call.1} parent=5 // pred_fallthru
        _
      %p1130 = scmp.le.s32.totalorder 2, %s12
      // Predicated region
      $region37: #{tpu_custom_call.1} parent=5 // pred_check
        %p1131 = pneg %p1130
      $region38: #{tpu_custom_call.1} parent=5 // pred_check_branch
        %1133 = sbr.rel (%p1131) target = $region40
      $region39: #{tpu_custom_call.1} parent=5 // pred_region
        %s1134 = ssub.s32 %s12, 2
        // Predicated region
        $region41: #{tpu_custom_call.1} parent=39 // pred_check
          %p1135 = pneg %p109
        $region42: #{tpu_custom_call.1} parent=39 // pred_check_branch
          %1137 = sbr.rel (%p1135) target = $region44
        $region43: #{tpu_custom_call.1} parent=39 // pred_region
          %s1138 = sand.u32 %s94, 1
          %s1139 = scalar_lea.sflag [#allocation3], %s1138
          %s1140 = sand.u32 %s94, 1
          %s1141 = smul.addr %s1140, 6
          %s1142 = scalar_lea.vmem [#allocation2], %s1141
          %1144 = dma.done %s1139, 96
        $region44: #{tpu_custom_call.1} parent=39 // pred_fallthru
          _
      $region40: #{tpu_custom_call.1} parent=5 // pred_fallthru
        _
    $region6: #{tpu_custom_call.1} parent=1 // loop_footer
      %s16 = sadd.s32 1, %s12
    $region7: #{tpu_custom_call.1} parent=1 // loop_footer_branch
      %11 = sbr.rel target = $region3
    $region8: #{tpu_custom_call.1} parent=1 // loop_exit
      _
    %1145 = vsyncpa [#allocation3], 1
    %s1146 = scalar_lea.sflag [#allocation3], 1
    %1147 = vsyncpa %s1146, 1

</llo_original>
